<compile_context>
chip_gen: v5e
topology: v5e:2x2
jax: 0.10.0
libtpu: 0.0.40
codegen_flags: <defaults>
</compile_context>

<pallas_src>
import math

import jax
import jax.numpy as jnp
from jax.experimental import pallas as pl
from jax.experimental.pallas import tpu as pltpu


# ---------------------------------------------------------------------------
# Static shape math (exact port of AdaptivePadding.get_pad_shape).
# ---------------------------------------------------------------------------
def _to_2tuple(v):
    if isinstance(v, (tuple, list)):
        assert len(v) == 2
        return tuple(v)
    return (v, v)


def _get_pad_shape(input_hw, kernel_size, stride, dilation):
    input_h, input_w = input_hw
    kernel_h, kernel_w = kernel_size
    stride_h, stride_w = stride
    output_h = math.ceil(input_h / stride_h)
    output_w = math.ceil(input_w / stride_w)
    pad_h = max((output_h - 1) * stride_h + (kernel_h - 1) * dilation[0] + 1 - input_h, 0)
    pad_w = max((output_w - 1) * stride_w + (kernel_w - 1) * dilation[1] + 1 - input_w, 0)
    return pad_h, pad_w


# ---------------------------------------------------------------------------
# Hardware-aware sizing helpers.
# ---------------------------------------------------------------------------
_LANE = 128
_LIVE_VMEM_BUDGET = 24 << 20  # target live VMEM: 2 bufs x (in_block + out_block)


def _round_up(x, m):
    return -(-x // m) * m


def _sublane_tile(dtype):
    itemsize = jnp.dtype(dtype).itemsize
    return max(8, 32 // itemsize)  # f32 -> 8, bf16 -> 16, int8/fp8 -> 32


def _plane_footprint_bytes(second_minor, minor, dtype):
    """True VMEM bytes of one (second_minor, minor) tile after layout padding."""
    itemsize = jnp.dtype(dtype).itemsize
    return (_round_up(second_minor, _sublane_tile(dtype))
            * _round_up(minor, _LANE) * itemsize)


def _num_tensorcores():
    """TensorCores sharing the grid via 'parallel' semantics (megacore parts)."""
    try:
        kind = jax.devices()[0].device_kind.lower()
    except Exception:  # pragma: no cover
        return 1
    if "v7" in kind or "v4" in kind or "v5p" in kind:
        return 2
    return 1


def _choose_block(total, per_plane_live_bytes, num_tc, multiple=1,
                  budget_bytes=_LIVE_VMEM_BUDGET):
    """Planes per block: largest count whose double-buffered, layout-padded
    (input + output) footprint fits the budget; on multi-TC parts prefer an
    even (multiple of core count) number of grid steps."""
    max_planes = max(1, budget_bytes // max(1, per_plane_live_bytes))

    def legalize(b):
        b = max(1, min(int(b), total))
        if b < total and multiple > 1:
            # block second-minor dim must be a sublane-tile multiple (or == total)
            b = min(total, max(multiple, (b // multiple) * multiple))
        return b

    b_blk = legalize(min(total, max_planes))
    if num_tc > 1 and total > 1:
        steps = pl.cdiv(total, b_blk)
        target_steps = _round_up(max(steps, num_tc), num_tc)
        b_even = legalize(pl.cdiv(total, target_steps))
        if 0 < b_even < b_blk:
            b_blk = b_even
    return b_blk


# ---------------------------------------------------------------------------
# Kernel bodies.
# ---------------------------------------------------------------------------
def _make_flat_kernel(top_len, in_len, bot_len):
    """pad_w == 0 variant: planes flattened to 1-D -> lane-dense stores."""

    def kernel(x_ref, o_ref):
        b = o_ref.shape[0]
        dt = o_ref.dtype
        o_ref[:, pl.ds(top_len, in_len)] = x_ref[...]
        if top_len:
            o_ref[:, pl.ds(0, top_len)] = jnp.zeros((b, top_len), dt)
        if bot_len:
            o_ref[:, pl.ds(top_len + in_len, bot_len)] = jnp.zeros((b, bot_len), dt)

    return kernel


def _make_full_tile_kernel(pad_top, pad_bottom, pad_left, pad_right,
                           in_h, in_w, out_w):
    """General variant: build the padded tile in registers, ONE full store."""

    def kernel(x_ref, o_ref):
        b = o_ref.shape[0]
        dt = o_ref.dtype
        x = x_ref[...]
        parts = []
        if pad_left:
            parts.append(jnp.zeros((b, in_h, pad_left), dt))
        parts.append(x)
        if pad_right:
            parts.append(jnp.zeros((b, in_h, pad_right), dt))
        rows = jnp.concatenate(parts, axis=2) if len(parts) > 1 else parts[0]
        parts = []
        if pad_top:
            parts.append(jnp.zeros((b, pad_top, out_w), dt))
        parts.append(rows)
        if pad_bottom:
            parts.append(jnp.zeros((b, pad_bottom, out_w), dt))
        tile = jnp.concatenate(parts, axis=1) if len(parts) > 1 else parts[0]
        o_ref[...] = tile

    return kernel


def _make_strip_kernel(pad_top, pad_bottom, pad_left, pad_right,
                       in_h, in_w, out_w):
    """Fallback: interior + disjoint pad strips (each element written once)."""

    def kernel(x_ref, o_ref):
        b = o_ref.shape[0]
        dt = o_ref.dtype
        o_ref[:, pl.ds(pad_top, in_h), pl.ds(pad_left, in_w)] = x_ref[...]
        if pad_top:
            o_ref[:, pl.ds(0, pad_top), :] = jnp.zeros((b, pad_top, out_w), dt)
        if pad_bottom:
            o_ref[:, pl.ds(pad_top + in_h, pad_bottom), :] = (
                jnp.zeros((b, pad_bottom, out_w), dt))
        if pad_left:
            o_ref[:, pl.ds(pad_top, in_h), pl.ds(0, pad_left)] = (
                jnp.zeros((b, in_h, pad_left), dt))
        if pad_right:
            o_ref[:, pl.ds(pad_top, in_h), pl.ds(pad_left + in_w, pad_right)] = (
                jnp.zeros((b, in_h, pad_right), dt))

    return kernel


# ---------------------------------------------------------------------------
# Wrapper (AdaptivePadding.forward).
# ---------------------------------------------------------------------------
def adaptive_padding(x, kernel_size=1, stride=1, dilation=1, padding='corner'):
    """Pallas implementation of AdaptivePadding.forward for NCHW inputs."""
    assert padding in ('same', 'corner')
    kernel_size = _to_2tuple(kernel_size)
    stride = _to_2tuple(stride)
    dilation = _to_2tuple(dilation)

    n, c, h, w = x.shape
    pad_h, pad_w = _get_pad_shape((h, w), kernel_size, stride, dilation)
    if pad_h == 0 and pad_w == 0:
        return x  # module semantics: input returned unchanged

    if padding == 'corner':
        pad_top, pad_left = 0, 0
    else:  # 'same'
        pad_top, pad_left = pad_h // 2, pad_w // 2
    pad_bottom, pad_right = pad_h - pad_top, pad_w - pad_left
    out_h, out_w = h + pad_h, w + pad_w

    total = n * c
    itemsize = jnp.dtype(x.dtype).itemsize
    num_tc = _num_tensorcores()
    cost = pl.CostEstimate(flops=0, transcendentals=0,
                           bytes_accessed=total * (h * w + out_h * out_w) * itemsize)

    def _params(live_bytes):
        vmem_limit = int(min(64 << 20,
                             max(32 << 20, live_bytes + live_bytes // 4 + (2 << 20))))
        return pltpu.CompilerParams(dimension_semantics=("parallel",),
                                    vmem_limit_bytes=vmem_limit)

    # ---- pad_w == 0: lane-dense flattened variant -------------------------
    if pad_w == 0:
        in_len, out_len = h * w, out_h * w
        sub = _sublane_tile(x.dtype)
        per_plane_live = 2 * (_round_up(in_len, _LANE) + _round_up(out_len, _LANE)) * itemsize
        b_blk = _choose_block(total, per_plane_live, num_tc, multiple=sub)
        live = 2 * _round_up(b_blk, sub) * (
            _round_up(in_len, _LANE) + _round_up(out_len, _LANE)) * itemsize
        grid = (pl.cdiv(total, b_blk),)
        out_flat = pl.pallas_call(
            _make_flat_kernel(pad_top * w, in_len, pad_bottom * w),
            out_shape=jax.ShapeDtypeStruct((total, out_len), x.dtype),
            grid_spec=pltpu.PrefetchScalarGridSpec(
                num_scalar_prefetch=0, grid=grid,
                in_specs=[pl.BlockSpec((b_blk, in_len), lambda i: (i, 0))],
                out_specs=pl.BlockSpec((b_blk, out_len), lambda i: (i, 0))),
            compiler_params=_params(live),
            cost_estimate=cost,
        )(x.reshape(total, in_len))
        return out_flat.reshape(n, c, out_h, out_w)

    # ---- general case: pad_w > 0 (with or without pad_h) -------------------
    in_fp = _plane_footprint_bytes(h, w, x.dtype)
    out_fp = _plane_footprint_bytes(out_h, out_w, x.dtype)
    per_plane_live = 2 * (in_fp + out_fp)
    b_blk = _choose_block(total, per_plane_live, num_tc)
    live = b_blk * per_plane_live
    grid = (pl.cdiv(total, b_blk),)
    x_flat = x.reshape(total, h, w)

    def _call(kernel_fn):
        return pl.pallas_call(
            kernel_fn,
            out_shape=jax.ShapeDtypeStruct((total, out_h, out_w), x.dtype),
            grid_spec=pltpu.PrefetchScalarGridSpec(
                num_scalar_prefetch=0, grid=grid,
                in_specs=[pl.BlockSpec((b_blk, h, w), lambda i: (i, 0, 0))],
                out_specs=pl.BlockSpec((b_blk, out_h, out_w), lambda i: (i, 0, 0))),
            compiler_params=_params(live),
            cost_estimate=cost,
        )(x_flat)

    args = (pad_top, pad_bottom, pad_left, pad_right, h, w, out_w)
    try:
        # Preferred: register-built tile, one aligned full-tile store.
        out_flat = _call(_make_full_tile_kernel(*args))
    except Exception:  # e.g. Mosaic build without unaligned-concat support
        # Safe fallback (eager-mode only guard): disjoint strip stores.
        out_flat = _call(_make_strip_kernel(*args))
    return out_flat.reshape(n, c, out_h, out_w)


# ---------------------------------------------------------------------------
# Pure-JAX reference (mirrors F.pad semantics used by the module).
# ---------------------------------------------------------------------------
def _reference(x, kernel_size, stride, dilation, padding):
    kernel_size = _to_2tuple(kernel_size)
    stride = _to_2tuple(stride)
    dilation = _to_2tuple(dilation)
    h, w = x.shape[-2:]
    pad_h, pad_w = _get_pad_shape((h, w), kernel_size, stride, dilation)
    if pad_h == 0 and pad_w == 0:
        return x
    if padding == 'corner':
        pads = ((0, 0), (0, 0), (0, pad_h), (0, pad_w))
    else:
        pads = ((0, 0), (0, 0),
                (pad_h // 2, pad_h - pad_h // 2),
                (pad_w // 2, pad_w - pad_w // 2))
    return jnp.pad(x, pads)


if __name__ == "__main__":
    key = jax.random.PRNGKey(0)

    # Docstring-consistent shape (scaled in N/C): H=15, W=17, kernel=stride=16.
    x = jax.random.normal(key, (2, 4, 15, 17), dtype=jnp.float32)

    # corner mode (default): pads bottom/right -> (16, 32)
    out_corner = jax.block_until_ready(
        adaptive_padding(x, kernel_size=16, stride=16, dilation=1, padding='corner'))
    assert out_corner.shape == (2, 4, 16, 32), out_corner.shape
    assert jnp.allclose(out_corner, _reference(x, 16, 16, 1, 'corner')), "corner mismatch"

    # same mode: nonzero left pad -> exercises offset placement
    out_same = jax.block_until_ready(
        adaptive_padding(x, kernel_size=16, stride=16, dilation=1, padding='same'))
    assert out_same.shape == (2, 4, 16, 32), out_same.shape
    assert jnp.allclose(out_same, _reference(x, 16, 16, 1, 'same')), "same mismatch"

    # pad_h == 0, pad_w > 0 (second docstring example)
    x16 = jax.random.normal(key, (2, 4, 16, 17), dtype=jnp.float32)
    out16 = jax.block_until_ready(
        adaptive_padding(x16, kernel_size=16, stride=16, dilation=1, padding='corner'))
    assert out16.shape == (2, 4, 16, 32), out16.shape
    assert jnp.allclose(out16, _reference(x16, 16, 16, 1, 'corner'))

    # pad_w == 0, pad_h > 0 -> lane-dense flattened variant
    xh = jax.random.normal(key, (2, 4, 15, 32), dtype=jnp.float32)
    outh = jax.block_until_ready(
        adaptive_padding(xh, kernel_size=16, stride=16, dilation=1, padding='corner'))
    assert outh.shape == (2, 4, 16, 32), outh.shape
    assert jnp.allclose(outh, _reference(xh, 16, 16, 1, 'corner'))

    # bf16 path (different sublane tile)
    xb = x.astype(jnp.bfloat16)
    outb = jax.block_until_ready(
        adaptive_padding(xb, kernel_size=16, stride=16, dilation=1, padding='corner'))
    assert outb.shape == (2, 4, 16, 32)
    assert jnp.array_equal(outb, _reference(xb, 16, 16, 1, 'corner'))

    # no-pad-needed path (returns input unchanged, matching the module)
    x2 = jax.random.normal(key, (2, 4, 16, 32), dtype=jnp.float32)
    out_nopad = jax.block_until_ready(
        adaptive_padding(x2, kernel_size=16, stride=16, dilation=1, padding='corner'))
    assert out_nopad.shape == x2.shape
    assert jnp.allclose(out_nopad, x2)

    print("KERNEL_OK")
</pallas_src>

<mosaic_0001>
module attributes {stable_mosaic.version = 11 : i64} {
  func.func @kernel(%arg0: i32, %arg1: memref<8x15x17xf32, #tpu.memory_space<vmem>>, %arg2: memref<8x16x32xf32, #tpu.memory_space<vmem>>) attributes {dimension_semantics = [#tpu.dimension_semantics<parallel>], iteration_bounds = array<i64: 1>, scalar_prefetch = 0 : i64, scratch_operands = 0 : i64, tpu.core_type = #tpu.core_type<tc>, window_params = [{transform_indices = @transform_0, window_bounds = array<i64: 8, 15, 17>}, {transform_indices = @transform_1, window_bounds = array<i64: 8, 16, 32>}]} {
    %c0 = arith.constant 0 : index
    %c0_0 = arith.constant 0 : index
    %c0_1 = arith.constant 0 : index
    %0 = vector.load %arg1[%c0, %c0_0, %c0_1] : memref<8x15x17xf32, #tpu.memory_space<vmem>>, vector<8x15x17xf32>
    %cst = arith.constant 0.000000e+00 : f32
    %1 = vector.broadcast %cst : f32 to vector<8x15x15xf32>
    %2 = tpu.concatenate %0, %1 in 2 : vector<8x15x17xf32>, vector<8x15x15xf32> -> vector<8x15x32xf32>
    %cst_2 = arith.constant 0.000000e+00 : f32
    %3 = vector.broadcast %cst_2 : f32 to vector<8x1x32xf32>
    %4 = tpu.concatenate %2, %3 in 1 : vector<8x15x32xf32>, vector<8x1x32xf32> -> vector<8x16x32xf32>
    %c0_3 = arith.constant 0 : index
    %c0_4 = arith.constant 0 : index
    %c0_5 = arith.constant 0 : index
    %5 = vector.load %arg2[%c0_3, %c0_4, %c0_5] : memref<8x16x32xf32, #tpu.memory_space<vmem>>, vector<8x16x32xf32>
    tpu.vector_store %arg2[%c0_3, %c0_4, %c0_5], %4 {strides = array<i32>} : memref<8x16x32xf32, #tpu.memory_space<vmem>>, vector<8x16x32xf32>,
    return
  }
  func.func @transform_0(%arg0: i32) -> (i32, i32, i32) {
    %c0_i32 = arith.constant 0 : i32
    %c0_i32_0 = arith.constant 0 : i32
    %c0_i32_1 = arith.constant 0 : i32
    return %arg0, %c0_i32, %c0_i32_0 : i32, i32, i32
  }
  func.func @transform_1(%arg0: i32) -> (i32, i32, i32) {
    %c0_i32 = arith.constant 0 : i32
    %c0_i32_0 = arith.constant 0 : i32
    %c0_i32_1 = arith.constant 0 : i32
    return %arg0, %c0_i32, %c0_i32_0 : i32, i32, i32
  }
}

module attributes {stable_mosaic.version = 11 : i64} {
  func.func @kernel(%arg0: i32, %arg1: memref<8x15x17xf32, #tpu.memory_space<vmem>>, %arg2: memref<8x16x32xf32, #tpu.memory_space<vmem>>) attributes {dimension_semantics = [#tpu.dimension_semantics<parallel>], iteration_bounds = array<i64: 1>, scalar_prefetch = 0 : i64, scratch_operands = 0 : i64, tpu.core_type = #tpu.core_type<tc>, window_params = [{transform_indices = @transform_0, window_bounds = array<i64: 8, 15, 17>}, {transform_indices = @transform_1, window_bounds = array<i64: 8, 16, 32>}]} {
    %c0 = arith.constant 0 : index
    %c0_0 = arith.constant 0 : index
    %c0_1 = arith.constant 0 : index
    %0 = vector.load %arg1[%c0, %c0_0, %c0_1] : memref<8x15x17xf32, #tpu.memory_space<vmem>>, vector<8x15x17xf32>
    %c0_2 = arith.constant 0 : index
    %c0_3 = arith.constant 0 : index
    %c0_4 = arith.constant 0 : index
    %1 = vector.load %arg2[%c0_2, %c0_3, %c0_4] : memref<8x16x32xf32, #tpu.memory_space<vmem>>, vector<8x15x17xf32>
    tpu.vector_store %arg2[%c0_2, %c0_3, %c0_4], %0 {strides = array<i32>} : memref<8x16x32xf32, #tpu.memory_space<vmem>>, vector<8x15x17xf32>,
    %cst = arith.constant 0.000000e+00 : f32
    %2 = vector.broadcast %cst : f32 to vector<8x1x32xf32>
    %c0_5 = arith.constant 0 : index
    %c15 = arith.constant 15 : index
    %c0_6 = arith.constant 0 : index
    %3 = vector.load %arg2[%c0_5, %c15, %c0_6] : memref<8x16x32xf32, #tpu.memory_space<vmem>>, vector<8x1x32xf32>
    tpu.vector_store %arg2[%c0_5, %c15, %c0_6], %2 {strides = array<i32>} : memref<8x16x32xf32, #tpu.memory_space<vmem>>, vector<8x1x32xf32>,
    %cst_7 = arith.constant 0.000000e+00 : f32
    %4 = vector.broadcast %cst_7 : f32 to vector<8x15x15xf32>
    %c0_8 = arith.constant 0 : index
    %c0_9 = arith.constant 0 : index
    %c17 = arith.constant 17 : index
    %5 = vector.load %arg2[%c0_8, %c0_9, %c17] : memref<8x16x32xf32, #tpu.memory_space<vmem>>, vector<8x15x15xf32>
    tpu.vector_store %arg2[%c0_8, %c0_9, %c17], %4 {strides = array<i32>} : memref<8x16x32xf32, #tpu.memory_space<vmem>>, vector<8x15x15xf32>,
    return
  }
  func.func @transform_0(%arg0: i32) -> (i32, i32, i32) {
    %c0_i32 = arith.constant 0 : i32
    %c0_i32_0 = arith.constant 0 : i32
    %c0_i32_1 = arith.constant 0 : i32
    return %arg0, %c0_i32, %c0_i32_0 : i32, i32, i32
  }
  func.func @transform_1(%arg0: i32) -> (i32, i32, i32) {
    %c0_i32 = arith.constant 0 : i32
    %c0_i32_0 = arith.constant 0 : i32
    %c0_i32_1 = arith.constant 0 : i32
    return %arg0, %c0_i32, %c0_i32_0 : i32, i32, i32
  }
}

</mosaic_0001>

<llo_original>
// kernel: tpu_custom_call.1
$region0: #{tpu_custom_call.1}
  #allocation0 [shape = 'u32[]', space=smem, size = 0x4, offset = 0x4, fixed_abs, tag = 'smem constant byte address 0x4 - core index']
  #allocation1 [shape = 'u32[72,128]{1,0:T(1,128)}', space=vmem, size = 0x9000, scoped, tag = 'internal scratch']
  %s0 = inlined_call_operand.vmem [shape: f32[8,15,17], index: 0, kind: input, shape index: {}]
  %s1 = inlined_call_operand.hbm [shape: f32[8,16,32], index: 1, kind: output, shape index: {}]
  %s2 = sld [smem:[#allocation0]]
  $region14: #{tpu_custom_call.1} parent=0
    _
  %s4 = ssub.s32 1, %s2
  %s5 = scalar_select 0, %s4, %s2
  $region1: #{tpu_custom_call.1} parent=0
    #allocation2 [shape = 'u8[65536]{0}', space=vmem, size = 0x10000, scoped, tag = 'output window, operand 0, single buffered']
    #allocation3 [shape = 's32[1]{0}', space=sflag, size = 0x4, scoped, tag = 'scoped memory for tpu_custom_call.1']
    %6 = vsyncpa [#allocation3], 0
    // Predicated region
    $region2: #{tpu_custom_call.1} parent=1 // pred_check
      _
    $region3: #{tpu_custom_call.1} parent=1 // pred_check_branch
      %8 = sbr.rel (0) target = $region5
    $region4: #{tpu_custom_call.1} parent=1 // pred_region
      _
    $region5: #{tpu_custom_call.1} parent=1 // pred_fallthru
      _
    %v9 = vld [vmem:[%s0] sm:$0xff]
    %v10 = vld [vmem:[%s0 + $0x8] sm:$0x7f]
    %v11 = vld [vmem:[%s0 + $0x10] sm:$0xff]
    %v12 = vld [vmem:[%s0 + $0x18] sm:$0x7f]
    %v13 = vld [vmem:[%s0 + $0x20] sm:$0xff]
    %v14 = vld [vmem:[%s0 + $0x28] sm:$0x7f]
    %v15 = vld [vmem:[%s0 + $0x30] sm:$0xff]
    %v16 = vld [vmem:[%s0 + $0x38] sm:$0x7f]
    %v17 = vld [vmem:[%s0 + $0x40] sm:$0xff]
    %v18 = vld [vmem:[%s0 + $0x48] sm:$0x7f]
    %v19 = vld [vmem:[%s0 + $0x50] sm:$0xff]
    %v20 = vld [vmem:[%s0 + $0x58] sm:$0x7f]
    %v21 = vld [vmem:[%s0 + $0x60] sm:$0xff]
    %v22 = vld [vmem:[%s0 + $0x68] sm:$0x7f]
    %v23 = vld [vmem:[%s0 + $0x70] sm:$0xff]
    %v24 = vld [vmem:[%s0 + $0x78] sm:$0x7f]
    %vm25 = vcmask 138240
    %v26 = vsel %vm25, %v9, 0.0
    %v27 = vsel %vm25, %v10, 0.0
    %v28 = vsel %vm25, %v11, 0.0
    %v29 = vsel %vm25, %v12, 0.0
    %v30 = vsel %vm25, %v13, 0.0
    %v31 = vsel %vm25, %v14, 0.0
    %v32 = vsel %vm25, %v15, 0.0
    %v33 = vsel %vm25, %v16, 0.0
    %v34 = vsel %vm25, %v17, 0.0
    %v35 = vsel %vm25, %v18, 0.0
    %v36 = vsel %vm25, %v19, 0.0
    %v37 = vsel %vm25, %v20, 0.0
    %v38 = vsel %vm25, %v21, 0.0
    %v39 = vsel %vm25, %v22, 0.0
    %v40 = vsel %vm25, %v23, 0.0
    %v41 = vsel %vm25, %v24, 0.0
    %vm42 = vcmask 1046528
    %v43 = vsel %vm42, %v27, 0.0
    %v44 = vsel %vm42, %v29, 0.0
    %v45 = vsel %vm42, %v31, 0.0
    %v46 = vsel %vm42, %v33, 0.0
    %v47 = vsel %vm42, %v35, 0.0
    %v48 = vsel %vm42, %v37, 0.0
    %v49 = vsel %vm42, %v39, 0.0
    %v50 = vsel %vm42, %v41, 0.0
    %vm51 = vcmask 261120
    %52 = vst.msk [vmem:[#allocation2] sm:$0xff] %vm51, %v26
    %53 = vst.msk [vmem:[#allocation2 + $0x8] sm:$0xff] %vm51, %v43
    %54 = vst.msk [vmem:[#allocation2 + $0x10] sm:$0xff] %vm51, %v28
    %55 = vst.msk [vmem:[#allocation2 + $0x18] sm:$0xff] %vm51, %v44
    %56 = vst.msk [vmem:[#allocation2 + $0x20] sm:$0xff] %vm51, %v30
    %57 = vst.msk [vmem:[#allocation2 + $0x28] sm:$0xff] %vm51, %v45
    %58 = vst.msk [vmem:[#allocation2 + $0x30] sm:$0xff] %vm51, %v32
    %59 = vst.msk [vmem:[#allocation2 + $0x38] sm:$0xff] %vm51, %v46
    %60 = vst.msk [vmem:[#allocation2 + $0x40] sm:$0xff] %vm51, %v34
    %61 = vst.msk [vmem:[#allocation2 + $0x48] sm:$0xff] %vm51, %v47
    %62 = vst.msk [vmem:[#allocation2 + $0x50] sm:$0xff] %vm51, %v36
    %63 = vst.msk [vmem:[#allocation2 + $0x58] sm:$0xff] %vm51, %v48
    %64 = vst.msk [vmem:[#allocation2 + $0x60] sm:$0xff] %vm51, %v38
    %65 = vst.msk [vmem:[#allocation2 + $0x68] sm:$0xff] %vm51, %v49
    %66 = vst.msk [vmem:[#allocation2 + $0x70] sm:$0xff] %vm51, %v40
    %67 = vst.msk [vmem:[#allocation2 + $0x78] sm:$0xff] %vm51, %v50
    // Predicated region
    $region6: #{tpu_custom_call.1} parent=1 // pred_check
      _
    $region7: #{tpu_custom_call.1} parent=1 // pred_check_branch
      %69 = sbr.rel (0) target = $region9
    $region8: #{tpu_custom_call.1} parent=1 // pred_region
      %71 = vsyncadd [#allocation3], 0
      %s72 = sshll.u32 [#allocation2], 4
      %s73 = int_to_ptr.vmem [resolvable:$true] %s72
      %s74 = sshll.u32 %s1, 4
      %s75 = int_to_ptr.hbm [resolvable:$true] %s74
      %80 = dma.vmem_to_hbm [thread:$0]  %s73, 2048, %s75, [#allocation3], 128, 128, 8
    $region9: #{tpu_custom_call.1} parent=1 // pred_fallthru
      _
    // Predicated region
    $region10: #{tpu_custom_call.1} parent=1 // pred_check
      _
    $region11: #{tpu_custom_call.1} parent=1 // pred_check_branch
      %82 = sbr.rel (0) target = $region13
    $region12: #{tpu_custom_call.1} parent=1 // pred_region
      %84 = dma.done [#allocation3], 2048
    $region13: #{tpu_custom_call.1} parent=1 // pred_fallthru
      _
    %85 = vsyncpa [#allocation3], 1

// kernel: tpu_custom_call.1
$region0: #{tpu_custom_call.1}
  #allocation0 [shape = 'u32[]', space=smem, size = 0x4, offset = 0x4, fixed_abs, tag = 'smem constant byte address 0x4 - core index']
  #allocation1 [shape = 'u32[72,128]{1,0:T(1,128)}', space=vmem, size = 0x9000, scoped, tag = 'internal scratch']
  %s0 = inlined_call_operand.vmem [shape: f32[8,15,17], index: 0, kind: input, shape index: {}]
  %s1 = inlined_call_operand.hbm [shape: f32[8,16,32], index: 1, kind: output, shape index: {}]
  %s2 = sld [smem:[#allocation0]]
  $region14: #{tpu_custom_call.1} parent=0
    _
  %s4 = ssub.s32 1, %s2
  %s5 = scalar_select 0, %s4, %s2
  $region1: #{tpu_custom_call.1} parent=0
    #allocation2 [shape = 'u8[65536]{0}', space=vmem, size = 0x10000, scoped, tag = 'output window, operand 0, single buffered']
    #allocation3 [shape = 's32[1]{0}', space=sflag, size = 0x4, scoped, tag = 'scoped memory for tpu_custom_call.1']
    %6 = vsyncpa [#allocation3], 0
    // Predicated region
    $region2: #{tpu_custom_call.1} parent=1 // pred_check
      _
    $region3: #{tpu_custom_call.1} parent=1 // pred_check_branch
      %8 = sbr.rel (0) target = $region5
    $region4: #{tpu_custom_call.1} parent=1 // pred_region
      _
    $region5: #{tpu_custom_call.1} parent=1 // pred_fallthru
      _
    %v9 = vld [vmem:[%s0] sm:$0xff]
    %v10 = vld [vmem:[%s0 + $0x8] sm:$0x7f]
    %v11 = vld [vmem:[%s0 + $0x10] sm:$0xff]
    %v12 = vld [vmem:[%s0 + $0x18] sm:$0x7f]
    %v13 = vld [vmem:[%s0 + $0x20] sm:$0xff]
    %v14 = vld [vmem:[%s0 + $0x28] sm:$0x7f]
    %v15 = vld [vmem:[%s0 + $0x30] sm:$0xff]
    %v16 = vld [vmem:[%s0 + $0x38] sm:$0x7f]
    %v17 = vld [vmem:[%s0 + $0x40] sm:$0xff]
    %v18 = vld [vmem:[%s0 + $0x48] sm:$0x7f]
    %v19 = vld [vmem:[%s0 + $0x50] sm:$0xff]
    %v20 = vld [vmem:[%s0 + $0x58] sm:$0x7f]
    %v21 = vld [vmem:[%s0 + $0x60] sm:$0xff]
    %v22 = vld [vmem:[%s0 + $0x68] sm:$0x7f]
    %v23 = vld [vmem:[%s0 + $0x70] sm:$0xff]
    %v24 = vld [vmem:[%s0 + $0x78] sm:$0x7f]
    %vm25 = vcmask 138240
    %26 = vst.msk [vmem:[#allocation2] sm:$0xff] %vm25, %v9
    %vm27 = vcmask 137216
    %28 = vst.msk [vmem:[#allocation2 + $0x8] sm:$0x7f] %vm27, %v10
    %29 = vst.msk [vmem:[#allocation2 + $0x10] sm:$0xff] %vm25, %v11
    %30 = vst.msk [vmem:[#allocation2 + $0x18] sm:$0x7f] %vm27, %v12
    %31 = vst.msk [vmem:[#allocation2 + $0x20] sm:$0xff] %vm25, %v13
    %32 = vst.msk [vmem:[#allocation2 + $0x28] sm:$0x7f] %vm27, %v14
    %33 = vst.msk [vmem:[#allocation2 + $0x30] sm:$0xff] %vm25, %v15
    %34 = vst.msk [vmem:[#allocation2 + $0x38] sm:$0x7f] %vm27, %v16
    %35 = vst.msk [vmem:[#allocation2 + $0x40] sm:$0xff] %vm25, %v17
    %36 = vst.msk [vmem:[#allocation2 + $0x48] sm:$0x7f] %vm27, %v18
    %37 = vst.msk [vmem:[#allocation2 + $0x50] sm:$0xff] %vm25, %v19
    %38 = vst.msk [vmem:[#allocation2 + $0x58] sm:$0x7f] %vm27, %v20
    %39 = vst.msk [vmem:[#allocation2 + $0x60] sm:$0xff] %vm25, %v21
    %40 = vst.msk [vmem:[#allocation2 + $0x68] sm:$0x7f] %vm27, %v22
    %41 = vst.msk [vmem:[#allocation2 + $0x70] sm:$0xff] %vm25, %v23
    %42 = vst.msk [vmem:[#allocation2 + $0x78] sm:$0x7f] %vm27, %v24
    %vm43 = vcmask 253952
    %44 = vst.msk [vmem:[#allocation2 + $0xf] sm:$0x1] %vm43, 0.0
    %45 = vst.msk [vmem:[#allocation2 + $0x1f] sm:$0x1] %vm43, 0.0
    %46 = vst.msk [vmem:[#allocation2 + $0x2f] sm:$0x1] %vm43, 0.0
    %47 = vst.msk [vmem:[#allocation2 + $0x3f] sm:$0x1] %vm43, 0.0
    %48 = vst.msk [vmem:[#allocation2 + $0x4f] sm:$0x1] %vm43, 0.0
    %49 = vst.msk [vmem:[#allocation2 + $0x5f] sm:$0x1] %vm43, 0.0
    %50 = vst.msk [vmem:[#allocation2 + $0x6f] sm:$0x1] %vm43, 0.0
    %51 = vst.msk [vmem:[#allocation2 + $0x7f] sm:$0x1] %vm43, 0.0
    %vm52 = vcmask 261256
    %53 = vst.msk [vmem:[#allocation2] sm:$0xff] %vm52, 0.0
    %vm54 = vcmask 260232
    %55 = vst.msk [vmem:[#allocation2 + $0x8] sm:$0x7f] %vm54, 0.0
    %56 = vst.msk [vmem:[#allocation2 + $0x10] sm:$0xff] %vm52, 0.0
    %57 = vst.msk [vmem:[#allocation2 + $0x18] sm:$0x7f] %vm54, 0.0
    %58 = vst.msk [vmem:[#allocation2 + $0x20] sm:$0xff] %vm52, 0.0
    %59 = vst.msk [vmem:[#allocation2 + $0x28] sm:$0x7f] %vm54, 0.0
    %60 = vst.msk [vmem:[#allocation2 + $0x30] sm:$0xff] %vm52, 0.0
    %61 = vst.msk [vmem:[#allocation2 + $0x38] sm:$0x7f] %vm54, 0.0
    %62 = vst.msk [vmem:[#allocation2 + $0x40] sm:$0xff] %vm52, 0.0
    %63 = vst.msk [vmem:[#allocation2 + $0x48] sm:$0x7f] %vm54, 0.0
    %64 = vst.msk [vmem:[#allocation2 + $0x50] sm:$0xff] %vm52, 0.0
    %65 = vst.msk [vmem:[#allocation2 + $0x58] sm:$0x7f] %vm54, 0.0
    %66 = vst.msk [vmem:[#allocation2 + $0x60] sm:$0xff] %vm52, 0.0
    %67 = vst.msk [vmem:[#allocation2 + $0x68] sm:$0x7f] %vm54, 0.0
    %68 = vst.msk [vmem:[#allocation2 + $0x70] sm:$0xff] %vm52, 0.0
    %69 = vst.msk [vmem:[#allocation2 + $0x78] sm:$0x7f] %vm54, 0.0
    // Predicated region
    $region6: #{tpu_custom_call.1} parent=1 // pred_check
      _
    $region7: #{tpu_custom_call.1} parent=1 // pred_check_branch
      %71 = sbr.rel (0) target = $region9
    $region8: #{tpu_custom_call.1} parent=1 // pred_region
      %73 = vsyncadd [#allocation3], 0
      %s74 = sshll.u32 [#allocation2], 4
      %s75 = int_to_ptr.vmem [resolvable:$true] %s74
      %s76 = sshll.u32 %s1, 4
      %s77 = int_to_ptr.hbm [resolvable:$true] %s76
      %82 = dma.vmem_to_hbm [thread:$0]  %s75, 2048, %s77, [#allocation3], 128, 128, 8
    $region9: #{tpu_custom_call.1} parent=1 // pred_fallthru
      _
    // Predicated region
    $region10: #{tpu_custom_call.1} parent=1 // pred_check
      _
    $region11: #{tpu_custom_call.1} parent=1 // pred_check_branch
      %84 = sbr.rel (0) target = $region13
    $region12: #{tpu_custom_call.1} parent=1 // pred_region
      %86 = dma.done [#allocation3], 2048
    $region13: #{tpu_custom_call.1} parent=1 // pred_fallthru
      _
    %87 = vsyncpa [#allocation3], 1

</llo_original>
